<compile_context>
chip_gen: v5e
topology: v5e:2x2
jax: 0.10.0
libtpu: 0.0.40
codegen_flags: <defaults>
</compile_context>

<pallas_src>
import copy
import functools
import math

import jax
import jax.numpy as jnp
from jax import lax
from jax.experimental import pallas as pl
from jax.experimental.pallas import tpu as pltpu

EPS = 1e-5
_VMEM_LIMIT_BYTES = 32 * 1024 * 1024       # explicit scoped-VMEM limit (safe v5e/v6e/v7x)
_IO_VMEM_BUDGET_BYTES = 16 * 1024 * 1024   # budget for double-buffered IO tiles


def _round_up(x, m):
    return ((x + m - 1) // m) * m


def _pick_row_tile(n_rows, d, itemsize, n_io_arrays):
    """Largest row tile (multiple of 8) whose double-buffered IO fits the budget."""
    per_row = d * itemsize * n_io_arrays * 2   # x2: double buffering
    tr = _IO_VMEM_BUDGET_BYTES // max(per_row, 1)
    tr = max(8, min(1024, (tr // 8) * 8))
    return min(tr, _round_up(n_rows, 8))


# ---------------- Pallas kernels ----------------

def _layernorm_kernel(x_ref, g_ref, b_ref, o_ref):
    # x_ref: (TR, D) row tile; g_ref/b_ref: (1, D) f32, resident across the grid.
    x = x_ref[...].astype(jnp.float32)
    inv_d = jnp.float32(1.0 / x.shape[-1])
    s1 = jnp.sum(x, axis=-1, keepdims=True)
    s2 = jnp.sum(x * x, axis=-1, keepdims=True)     # both XLU reductions back-to-back
    mean = s1 * inv_d
    var = s2 * inv_d - mean * mean                  # biased variance (PyTorch LN)
    inv = lax.rsqrt(var + EPS)
    o_ref[...] = ((x - mean) * inv * g_ref[...] + b_ref[...]).astype(o_ref.dtype)


def _add_layernorm_kernel(x_ref, r_ref, g_ref, b_ref, s_ref, o_ref):
    # Fused residual add + LayerNorm: s = x + r ; o = LN(s). One HBM pass, two outputs.
    s = x_ref[...].astype(jnp.float32) + r_ref[...].astype(jnp.float32)
    s_ref[...] = s.astype(s_ref.dtype)
    inv_d = jnp.float32(1.0 / s.shape[-1])
    s1 = jnp.sum(s, axis=-1, keepdims=True)
    s2 = jnp.sum(s * s, axis=-1, keepdims=True)
    mean = s1 * inv_d
    var = s2 * inv_d - mean * mean
    inv = lax.rsqrt(var + EPS)
    o_ref[...] = ((s - mean) * inv * g_ref[...] + b_ref[...]).astype(o_ref.dtype)


# ---------------- tiled pallas_call helper + wrappers ----------------

def _run_rowwise(kernel, row_arrays, param_arrays, n_outputs, block_rows):
    """Run `kernel` over row tiles. row_arrays: (R, D) each; param_arrays: (1, D) each."""
    R, D = row_arrays[0].shape
    itemsize = row_arrays[0].dtype.itemsize
    tr = block_rows or _pick_row_tile(R, D, itemsize, len(row_arrays) + n_outputs)
    tr = max(8, (min(tr, _round_up(R, 8)) // 8) * 8)
    r_pad = _round_up(R, tr)
    if r_pad != R:
        row_arrays = [jnp.pad(a, ((0, r_pad - R), (0, 0))) for a in row_arrays]

    row_spec = pl.BlockSpec((tr, D), lambda i: (i, 0))
    param_spec = pl.BlockSpec((1, D), lambda i: (0, 0))
    out_shape = tuple(jax.ShapeDtypeStruct((r_pad, D), row_arrays[0].dtype)
                      for _ in range(n_outputs))

    outs = pl.pallas_call(
        kernel,
        out_shape=out_shape,
        grid_spec=pl.GridSpec(
            grid=(r_pad // tr,),
            in_specs=[row_spec] * len(row_arrays) + [param_spec] * len(param_arrays),
            out_specs=tuple(row_spec for _ in range(n_outputs)),
        ),
        compiler_params=pltpu.CompilerParams(
            dimension_semantics=("parallel",),
            vmem_limit_bytes=_VMEM_LIMIT_BYTES,
        ),
    )(*row_arrays, *param_arrays)
    if r_pad != R:
        outs = tuple(o[:R] for o in outs)
    return outs


def layernorm_pallas(x, gamma, beta, *, block_rows=None):
    """y = LayerNorm(x) over the last axis (PyTorch nn.LayerNorm semantics)."""
    orig_shape = x.shape
    d = orig_shape[-1]
    x2d = x.reshape(-1, d)
    g = gamma.reshape(1, d).astype(jnp.float32)   # cast hoisted out of the kernel
    b = beta.reshape(1, d).astype(jnp.float32)
    (out,) = _run_rowwise(_layernorm_kernel, [x2d], [g, b], 1, block_rows)
    return out.reshape(orig_shape)


def add_layernorm_pallas(x, res, gamma, beta, *, block_rows=None):
    """Fused (x + res, LayerNorm(x + res)) in a single pass over HBM."""
    orig_shape = x.shape
    d = orig_shape[-1]
    x2d = x.reshape(-1, d)
    r2d = res.reshape(-1, d)
    g = gamma.reshape(1, d).astype(jnp.float32)
    b = beta.reshape(1, d).astype(jnp.float32)
    s, o = _run_rowwise(_add_layernorm_kernel, [x2d, r2d], [g, b], 2, block_rows)
    return s.reshape(orig_shape), o.reshape(orig_shape)


# ---------------- Decoder (spec equivalent) ----------------

class Decoder:
    """Pallas/JAX equivalent of the PyTorch Decoder: N cloned layers then LayerNorm."""

    def __init__(self, layer_fn, layer_params, num_layers, norm_gamma, norm_beta,
                 *, block_rows=None):
        # clones(): N identical deep-copied layers.
        self.layers = [copy.deepcopy(layer_params) for _ in range(num_layers)]
        self.layer_fn = layer_fn
        self.norm_gamma = norm_gamma
        self.norm_beta = norm_beta
        self.block_rows = block_rows

    def __call__(self, x, memory, tgt_src_mask, tgt_tgt_mask):
        for p in self.layers:
            x = self.layer_fn(x, memory, tgt_src_mask, tgt_tgt_mask, p)
        return layernorm_pallas(x, self.norm_gamma, self.norm_beta,
                                block_rows=self.block_rows)


# TODO(synk): the decoder-layer submodule is a constructor argument in the PyTorch
# spec and is not defined there; a representative pre-LN DecoderLayer (masked
# self-attention, cross-attention over `memory`, FFN) is used for the demo. Its
# attention/FFN math runs as plain JAX (XLA fuses the residual adds into matmul
# epilogues); LayerNorm and residual+LayerNorm use the Pallas kernels above.
def make_decoder_layer(ln, add_ln):
    def layer(x, memory, tgt_src_mask, tgt_tgt_mask, p):
        d = x.shape[-1]
        scale = 1.0 / math.sqrt(d)

        # sublayer 1: masked self-attention on LN(x)
        h = ln(x, p["ln1_g"], p["ln1_b"])
        logits = jnp.einsum("bqd,bkd->bqk", h, h) * scale
        logits = jnp.where(tgt_tgt_mask, logits, -1e9)
        sa = jnp.einsum("bqk,bkd->bqd", jax.nn.softmax(logits, axis=-1), h)
        sa = sa @ p["Wo_self"]

        # residual add fused with the next sublayer's LayerNorm (single HBM pass)
        x, h = add_ln(x, sa, p["ln2_g"], p["ln2_b"])

        # sublayer 2: cross-attention over memory
        logits = jnp.einsum("bqd,bkd->bqk", h, memory) * scale
        logits = jnp.where(tgt_src_mask, logits, -1e9)
        ca = jnp.einsum("bqk,bkd->bqd", jax.nn.softmax(logits, axis=-1), memory)
        ca = ca @ p["Wo_cross"]

        x, h = add_ln(x, ca, p["ln3_g"], p["ln3_b"])

        # sublayer 3: position-wise FFN; final residual add left to XLA fusion
        ff = jax.nn.relu(h @ p["W1"] + p["b1"]) @ p["W2"] + p["b2"]
        return x + ff

    return layer


# ---------------- pure-JAX reference LN / add+LN ----------------

def _ln_ref(x, g, b):
    xf = x.astype(jnp.float32)
    mean = jnp.mean(xf, axis=-1, keepdims=True)
    var = jnp.mean((xf - mean) ** 2, axis=-1, keepdims=True)
    return ((xf - mean) * lax.rsqrt(var + EPS) * g + b).astype(x.dtype)


def _add_ln_ref(x, r, g, b):
    s = (x.astype(jnp.float32) + r.astype(jnp.float32)).astype(x.dtype)
    return s, _ln_ref(s, g, b)


# ---------------- demo ----------------

if __name__ == "__main__":
    B, S_TGT, S_MEM, D, D_FF = 2, 8, 16, 128, 256
    NUM_LAYERS = 2
    BLOCK_ROWS = 8   # small row tile so the demo actually exercises a multi-step grid

    key = jax.random.PRNGKey(0)
    ks = jax.random.split(key, 16)

    x = jax.random.normal(ks[0], (B, S_TGT, D), dtype=jnp.float32)
    memory = jax.random.normal(ks[1], (B, S_MEM, D), dtype=jnp.float32)

    # causal target-target mask; target-source mask hides last 4 memory slots of batch 1
    causal = jnp.tril(jnp.ones((S_TGT, S_TGT), dtype=jnp.float32)) > 0
    tgt_tgt_mask = jnp.broadcast_to(causal[None], (B, S_TGT, S_TGT))
    tgt_src_mask = jnp.ones((B, S_TGT, S_MEM), dtype=bool).at[1, :, S_MEM - 4:].set(False)

    params = {
        "ln1_g": 1.0 + 0.1 * jax.random.normal(ks[2], (D,), jnp.float32),
        "ln1_b": 0.1 * jax.random.normal(ks[3], (D,), jnp.float32),
        "ln2_g": 1.0 + 0.1 * jax.random.normal(ks[4], (D,), jnp.float32),
        "ln2_b": 0.1 * jax.random.normal(ks[5], (D,), jnp.float32),
        "ln3_g": 1.0 + 0.1 * jax.random.normal(ks[6], (D,), jnp.float32),
        "ln3_b": 0.1 * jax.random.normal(ks[7], (D,), jnp.float32),
        "Wo_self": 0.05 * jax.random.normal(ks[8], (D, D), jnp.float32),
        "Wo_cross": 0.05 * jax.random.normal(ks[9], (D, D), jnp.float32),
        "W1": 0.05 * jax.random.normal(ks[10], (D, D_FF), jnp.float32),
        "b1": 0.05 * jax.random.normal(ks[11], (D_FF,), jnp.float32),
        "W2": 0.05 * jax.random.normal(ks[12], (D_FF, D), jnp.float32),
        "b2": 0.05 * jax.random.normal(ks[13], (D,), jnp.float32),
    }
    norm_gamma = 1.0 + 0.1 * jax.random.normal(ks[14], (D,), jnp.float32)
    norm_beta = 0.1 * jax.random.normal(ks[15], (D,), jnp.float32)

    ln_pallas = functools.partial(layernorm_pallas, block_rows=BLOCK_ROWS)
    add_ln_pallas = functools.partial(add_layernorm_pallas, block_rows=BLOCK_ROWS)

    with jax.default_matmul_precision("highest"):
        decoder = Decoder(make_decoder_layer(ln_pallas, add_ln_pallas), params,
                          NUM_LAYERS, norm_gamma, norm_beta, block_rows=BLOCK_ROWS)
        out = decoder(x, memory, tgt_src_mask, tgt_tgt_mask)
        out = jax.block_until_ready(out)

        # pure-JAX reference with identical structure (reference LayerNorm).
        ref_layer = make_decoder_layer(_ln_ref, _add_ln_ref)
        xr = x
        for _ in range(NUM_LAYERS):
            xr = ref_layer(xr, memory, tgt_src_mask, tgt_tgt_mask, params)
        ref = _ln_ref(xr, norm_gamma, norm_beta)

    assert out.shape == (B, S_TGT, D)
    max_err = float(jnp.max(jnp.abs(out - ref)))
    assert jnp.allclose(out, ref, atol=2e-4, rtol=2e-4), max_err

    print("KERNEL_OK")
</pallas_src>

<mosaic_0001>
module attributes {stable_mosaic.version = 11 : i64} {
  func.func @_layernorm_kernel(%arg0: i32, %arg1: memref<8x128xf32, #tpu.memory_space<vmem>>, %arg2: memref<1x128xf32, #tpu.memory_space<vmem>>, %arg3: memref<1x128xf32, #tpu.memory_space<vmem>>, %arg4: memref<8x128xf32, #tpu.memory_space<vmem>>) attributes {dimension_semantics = [#tpu.dimension_semantics<parallel>], iteration_bounds = array<i64: 2>, scalar_prefetch = 0 : i64, scratch_operands = 0 : i64, tpu.core_type = #tpu.core_type<tc>, window_params = [{transform_indices = @transform_0, window_bounds = array<i64: 8, 128>}, {pipeline_mode = #tpu.pipeline_mode<synchronous>, transform_indices = @transform_1, window_bounds = array<i64: 1, 128>}, {pipeline_mode = #tpu.pipeline_mode<synchronous>, transform_indices = @transform_2, window_bounds = array<i64: 1, 128>}, {transform_indices = @transform_3, window_bounds = array<i64: 8, 128>}]} {
    %c0 = arith.constant 0 : index
    %c0_0 = arith.constant 0 : index
    %0 = vector.load %arg1[%c0, %c0_0] : memref<8x128xf32, #tpu.memory_space<vmem>>, vector<8x128xf32>
    %cst = arith.constant dense<0.000000e+00> : vector<8xf32>
    %1 = vector.multi_reduction <add>, %0, %cst [1] : vector<8x128xf32> to vector<8xf32>
    %2 = vector.shape_cast %1 : vector<8xf32> to vector<8x1xf32>
    %3 = arith.mulf %0, %0 : vector<8x128xf32>
    %cst_1 = arith.constant dense<0.000000e+00> : vector<8xf32>
    %4 = vector.multi_reduction <add>, %3, %cst_1 [1] : vector<8x128xf32> to vector<8xf32>
    %5 = vector.shape_cast %4 : vector<8xf32> to vector<8x1xf32>
    %cst_2 = arith.constant 7.812500e-03 : f32
    %6 = vector.broadcast %cst_2 : f32 to vector<8x1xf32>
    %7 = arith.mulf %2, %6 : vector<8x1xf32>
    %cst_3 = arith.constant 7.812500e-03 : f32
    %8 = vector.broadcast %cst_3 : f32 to vector<8x1xf32>
    %9 = arith.mulf %5, %8 : vector<8x1xf32>
    %10 = arith.mulf %7, %7 : vector<8x1xf32>
    %11 = arith.subf %9, %10 : vector<8x1xf32>
    %cst_4 = arith.constant 9.99999974E-6 : f32
    %12 = vector.broadcast %cst_4 : f32 to vector<8x1xf32>
    %13 = arith.addf %11, %12 : vector<8x1xf32>
    %14 = math.rsqrt %13 : vector<8x1xf32>
    %15 = vector.broadcast %7 : vector<8x1xf32> to vector<8x128xf32>
    %16 = arith.subf %0, %15 : vector<8x128xf32>
    %17 = vector.broadcast %14 : vector<8x1xf32> to vector<8x128xf32>
    %18 = arith.mulf %16, %17 : vector<8x128xf32>
    %c0_5 = arith.constant 0 : index
    %c0_6 = arith.constant 0 : index
    %19 = vector.load %arg2[%c0_5, %c0_6] : memref<1x128xf32, #tpu.memory_space<vmem>>, vector<1x128xf32>
    %20 = vector.broadcast %19 : vector<1x128xf32> to vector<8x128xf32>
    %21 = arith.mulf %18, %20 : vector<8x128xf32>
    %c0_7 = arith.constant 0 : index
    %c0_8 = arith.constant 0 : index
    %22 = vector.load %arg3[%c0_7, %c0_8] : memref<1x128xf32, #tpu.memory_space<vmem>>, vector<1x128xf32>
    %23 = vector.broadcast %22 : vector<1x128xf32> to vector<8x128xf32>
    %24 = arith.addf %21, %23 : vector<8x128xf32>
    %c0_9 = arith.constant 0 : index
    %c0_10 = arith.constant 0 : index
    %25 = vector.load %arg4[%c0_9, %c0_10] : memref<8x128xf32, #tpu.memory_space<vmem>>, vector<8x128xf32>
    tpu.vector_store %arg4[%c0_9, %c0_10], %24 {strides = array<i32>} : memref<8x128xf32, #tpu.memory_space<vmem>>, vector<8x128xf32>,
    return
  }
  func.func @transform_0(%arg0: i32) -> (i32, i32) {
    %c0_i32 = arith.constant 0 : i32
    %c0_i32_0 = arith.constant 0 : i32
    return %arg0, %c0_i32 : i32, i32
  }
  func.func @transform_1(%arg0: i32) -> (i32, i32) {
    %c0_i32 = arith.constant 0 : i32
    %c0_i32_0 = arith.constant 0 : i32
    %c0_i32_1 = arith.constant 0 : i32
    return %c0_i32, %c0_i32_0 : i32, i32
  }
  func.func @transform_2(%arg0: i32) -> (i32, i32) {
    %c0_i32 = arith.constant 0 : i32
    %c0_i32_0 = arith.constant 0 : i32
    %c0_i32_1 = arith.constant 0 : i32
    return %c0_i32, %c0_i32_0 : i32, i32
  }
  func.func @transform_3(%arg0: i32) -> (i32, i32) {
    %c0_i32 = arith.constant 0 : i32
    %c0_i32_0 = arith.constant 0 : i32
    return %arg0, %c0_i32 : i32, i32
  }
}

</mosaic_0001>

<llo_original>
// kernel: tpu_custom_call.1
$region0: #{tpu_custom_call.1}
  #allocation0 [shape = 'u32[]', space=smem, size = 0x4, offset = 0x4, fixed_abs, tag = 'smem constant byte address 0x4 - core index']
  #allocation1 [shape = 'u32[72,128]{1,0:T(1,128)}', space=vmem, size = 0x9000, scoped, tag = 'internal scratch']
  %s0 = inlined_call_operand.hbm [shape: f32[16,128], index: 0, kind: input, shape index: {}]
  %s1 = inlined_call_operand.hbm [shape: f32[1,128], index: 1, kind: input, shape index: {}]
  %s2 = inlined_call_operand.vmem [shape: f32[1,128], index: 2, kind: input, shape index: {}]
  %s3 = inlined_call_operand.hbm [shape: f32[16,128], index: 3, kind: output, shape index: {}]
  %s4 = sld [smem:[#allocation0]]
  $region53: #{tpu_custom_call.1} parent=0
    _
  %s6 = ssub.s32 1, %s4
  %s7 = scalar_select 0, %s6, %s4
  $region1: #{tpu_custom_call.1} parent=0
    #allocation2 [shape = 'u8[8192]{0}', space=vmem, size = 0x2000, scoped, tag = 'input window, operand 0']
    #allocation3 [shape = 's32[2]{0}', space=sflag, size = 0x8, scoped, tag = 'scoped memory for tpu_custom_call.1']
    #allocation4 [shape = 's32[2]{0}', space=sflag, size = 0x8, scoped, tag = 'scoped memory for tpu_custom_call.1']
    #allocation5 [shape = 'u8[512]{0}', space=vmem, size = 0x400, scoped, tag = 'input window, operand 1, single buffered']
    #allocation6 [shape = 's32[1]{0}', space=sflag, size = 0x4, scoped, tag = 'scoped memory for tpu_custom_call.1']
    #allocation7 [shape = 'u8[8192]{0}', space=vmem, size = 0x2000, scoped, tag = 'output window, operand 0']
    %8 = vsyncpa [#allocation3], 0
    %s9 = scalar_lea.sflag [#allocation3], 1
    %10 = vsyncpa %s9, 0
    %11 = vsyncpa [#allocation6], 0
    %12 = vsyncpa [#allocation4], 0
    %s13 = scalar_lea.sflag [#allocation4], 1
    %14 = vsyncpa %s13, 0
    loop: start=0, step=1, limit=4
    $region2: #{tpu_custom_call.1} parent=1 // loop_pre_header
      _
    $region3: #{tpu_custom_call.1} parent=1 // loop_header
      %s16 = sphi 0, %s20
      %p17 = scmp.ge.s32.totalorder %s16, 4
      %s26 = sphi 0, %s28
      %s29 = sphi 0, %s26
      %s30 = sphi 0, %s29
      %s46 = sphi 0, %s30
      %s50 = sphi 0, %s50
      %s52 = sphi 0, %s50
      %s53 = sphi 0, %s52
      %s67 = sphi 0, %s53
      %s71 = sphi 0, %s71
      %s73 = sphi 0, %s71
      %s74 = sphi 0, %s73
      %s88 = sphi 0, %s74
      %s94 = sphi 0, %s96
      %s97 = sphi 0, %s94
      %s98 = sphi 0, %s97
      %s114 = sphi 0, %s98
    $region4: #{tpu_custom_call.1} parent=1 // loop_header_branch
      %19 = sbr.rel (%p17) target = $region8
    $region5: #{tpu_custom_call.1} parent=1 // loop_body
      %s21 = ssub.s32 %s16, 1
      %s22 = ssub.s32 %s16, 2
      %s23 = sadd.s32 %s16, 1
      %s24 = ssub.s32 %s16, %s23
      %p25 = scmp.eq.s32.totalorder %s24, 0
      %s27 = sadd.s32 %s26, 1
      %s28 = scalar_select %p25, %s26, %s27
      %p31 = pneg %p25
      %p32 = scmp.eq.s32.totalorder %s16, 1
      %p33 = por %p31, %p32
      %p34 = scmp.ne.s32.totalorder %s26, %s29
      %p35 = scmp.eq.s32.totalorder %s16, 0
      %p36 = por %p34, %p35
      %p37 = scmp.ne.s32.totalorder %s26, %s29
      %p38 = scmp.eq.s32.totalorder %s21, 1
      %p39 = por %p37, %p38
      %p40 = scmp.ne.s32.totalorder %s29, %s30
      %p41 = scmp.eq.s32.totalorder %s21, 0
      %p42 = por %p40, %p41
      %p43 = scmp.ne.s32.totalorder %s29, %s30
      %p44 = scmp.eq.s32.totalorder %s22, 1
      %p45 = por %p43, %p44
      %p47 = scmp.ne.s32.totalorder %s30, %s46
      %p48 = scmp.eq.s32.totalorder %s22, 0
      %p49 = por %p47, %p48
      %s51 = sadd.s32 %s50, 1
      %p54 = scmp.eq.s32.totalorder %s16, 1
      %p55 = scmp.ne.s32.totalorder %s50, %s52
      %p56 = scmp.eq.s32.totalorder %s16, 0
      %p57 = por %p55, %p56
      %p58 = scmp.ne.s32.totalorder %s50, %s52
      %p59 = scmp.eq.s32.totalorder %s21, 1
      %p60 = por %p58, %p59
      %p61 = scmp.ne.s32.totalorder %s52, %s53
      %p62 = scmp.eq.s32.totalorder %s21, 0
      %p63 = por %p61, %p62
      %p64 = scmp.ne.s32.totalorder %s52, %s53
      %p65 = scmp.eq.s32.totalorder %s22, 1
      %p66 = por %p64, %p65
      %p68 = scmp.ne.s32.totalorder %s53, %s67
      %p69 = scmp.eq.s32.totalorder %s22, 0
      %p70 = por %p68, %p69
      %s72 = sadd.s32 %s71, 1
      %p75 = scmp.eq.s32.totalorder %s16, 1
      %p76 = scmp.ne.s32.totalorder %s71, %s73
      %p77 = scmp.eq.s32.totalorder %s16, 0
      %p78 = por %p76, %p77
      %p79 = scmp.ne.s32.totalorder %s71, %s73
      %p80 = scmp.eq.s32.totalorder %s21, 1
      %p81 = por %p79, %p80
      %p82 = scmp.ne.s32.totalorder %s73, %s74
      %p83 = scmp.eq.s32.totalorder %s21, 0
      %p84 = por %p82, %p83
      %p85 = scmp.ne.s32.totalorder %s73, %s74
      %p86 = scmp.eq.s32.totalorder %s22, 1
      %p87 = por %p85, %p86
      %p89 = scmp.ne.s32.totalorder %s74, %s88
      %p90 = scmp.eq.s32.totalorder %s22, 0
      %p91 = por %p89, %p90
      %s92 = ssub.s32 %s16, %s23
      %p93 = scmp.eq.s32.totalorder %s92, 0
      %s95 = sadd.s32 %s94, 1
      %s96 = scalar_select %p93, %s94, %s95
      %p99 = pneg %p93
      %p100 = scmp.eq.s32.totalorder %s16, 1
      %p101 = por %p99, %p100
      %p102 = scmp.ne.s32.totalorder %s94, %s97
      %p103 = scmp.eq.s32.totalorder %s16, 0
      %p104 = por %p102, %p103
      %p105 = scmp.ne.s32.totalorder %s94, %s97
      %p106 = scmp.eq.s32.totalorder %s21, 1
      %p107 = por %p105, %p106
      %p108 = scmp.ne.s32.totalorder %s97, %s98
      %p109 = scmp.eq.s32.totalorder %s21, 0
      %p110 = por %p108, %p109
      %p111 = scmp.ne.s32.totalorder %s97, %s98
      %p112 = scmp.eq.s32.totalorder %s22, 1
      %p113 = por %p111, %p112
      %p115 = scmp.ne.s32.totalorder %s98, %s114
      %p116 = scmp.eq.s32.totalorder %s22, 0
      %p117 = por %p115, %p116
      %p118 = scmp.le.s32.totalorder 1, %s16
      %p119 = scmp.lt.s32.totalorder %s16, 3
      %p120 = pnand %p118, %p119
      %p121 = pneg %p120
      // Predicated region
      $region9: #{tpu_custom_call.1} parent=5 // pred_check
        _
      $region10: #{tpu_custom_call.1} parent=5 // pred_check_branch
        %123 = sbr.rel (%p120) target = $region12
      $region11: #{tpu_custom_call.1} parent=5 // pred_region
        %s124 = ssub.s32 %s16, 1
        // Predicated region
        $region13: #{tpu_custom_call.1} parent=11 // pred_check
          %p125 = pneg %p63
        $region14: #{tpu_custom_call.1} parent=11 // pred_check_branch
          %127 = sbr.rel (%p125) target = $region16
        $region15: #{tpu_custom_call.1} parent=11 // pred_region
          %129 = vsyncadd [#allocation6], 0
          %s131 = sshll.u32 %s1, 4
          %s132 = int_to_ptr.hbm [resolvable:$true] %s131
          %s133 = sshll.u32 [#allocation5], 4
          %s134 = int_to_ptr.vmem [resolvable:$true] %s133
          %136 = dma.hbm_to_vmem [thread:$0]  %s132, 16, %s134, [#allocation6]
        $region16: #{tpu_custom_call.1} parent=11 // pred_fallthru
          _
        // Predicated region
        $region17: #{tpu_custom_call.1} parent=11 // pred_check
          %p137 = pneg %p84
        $region18: #{tpu_custom_call.1} parent=11 // pred_check_branch
          %139 = sbr.rel (%p137) target = $region20
        $region19: #{tpu_custom_call.1} parent=11 // pred_region
          _
        $region20: #{tpu_custom_call.1} parent=11 // pred_fallthru
          _
      $region12: #{tpu_custom_call.1} parent=5 // pred_fallthru
        _
      %p140 = scmp.lt.s32.totalorder %s16, 2
      // Predicated region
      $region21: #{tpu_custom_call.1} parent=5 // pred_check
        %p141 = pneg %p140
      $region22: #{tpu_custom_call.1} parent=5 // pred_check_branch
        %143 = sbr.rel (%p141) target = $region24
      $region23: #{tpu_custom_call.1} parent=5 // pred_region
        // Predicated region
        $region25: #{tpu_custom_call.1} parent=23 // pred_check
          %p144 = pneg %p36
        $region26: #{tpu_custom_call.1} parent=23 // pred_check_branch
          %146 = sbr.rel (%p144) target = $region28
        $region27: #{tpu_custom_call.1} parent=23 // pred_region
          %s147 = sand.u32 %s26, 1
          %s148 = scalar_lea.sflag [#allocation3], %s147
          %s149 = sand.u32 %s26, 1
          %s150 = smul.addr %s149, 8
          %s151 = scalar_lea.vmem [#allocation2], %s150
          %153 = vsyncadd %s148, 0
          %s154 = smul.addr %s16, 8
          %s155 = scalar_lea.hbm %s0, %s154
          %s157 = sshll.u32 %s155, 4
          %s158 = int_to_ptr.hbm [resolvable:$true] %s157
          %s159 = sshll.u32 %s151, 4
          %s160 = int_to_ptr.vmem [resolvable:$true] %s159
          %162 = dma.hbm_to_vmem [thread:$0]  %s158, 128, %s160, %s148
        $region28: #{tpu_custom_call.1} parent=23 // pred_fallthru
          _
      $region24: #{tpu_custom_call.1} parent=5 // pred_fallthru
        _
      %p163 = scmp.le.s32.totalorder 1, %s16
      %p164 = scmp.lt.s32.totalorder %s16, 3
      %p165 = pnand %p163, %p164
      %p166 = pneg %p165
      // Predicated region
      $region29: #{tpu_custom_call.1} parent=5 // pred_check
        _
      $region30: #{tpu_custom_call.1} parent=5 // pred_check_branch
        %168 = sbr.rel (%p165) target = $region32
      $region31: #{tpu_custom_call.1} parent=5 // pred_region
        %s169 = ssub.s32 %s16, 1
        %s170 = sand.u32 %s29, 1
        %s171 = scalar_lea.sflag [#allocation3], %s170
        %s172 = sand.u32 %s29, 1
        %s173 = smul.addr %s172, 8
        %s174 = scalar_lea.vmem [#allocation2], %s173
        // Predicated region
        $region33: #{tpu_custom_call.1} parent=31 // pred_check
          %p175 = pneg %p42
        $region34: #{tpu_custom_call.1} parent=31 // pred_check_branch
          %177 = sbr.rel (%p175) target = $region36
        $region35: #{tpu_custom_call.1} parent=31 // pred_region
          %179 = dma.done %s171, 128
        $region36: #{tpu_custom_call.1} parent=31 // pred_fallthru
          _
        // Predicated region
        $region37: #{tpu_custom_call.1} parent=31 // pred_check
          %p180 = pneg %p63
        $region38: #{tpu_custom_call.1} parent=31 // pred_check_branch
          %182 = sbr.rel (%p180) target = $region40
        $region39: #{tpu_custom_call.1} parent=31 // pred_region
          %184 = dma.done [#allocation6], 16
        $region40: #{tpu_custom_call.1} parent=31 // pred_fallthru
          _
        %s185 = sand.u32 %s29, 1
        %s186 = scalar_lea.sflag [#allocation3], %s185
        %s187 = sand.u32 %s29, 1
        %s188 = smul.addr %s187, 8
        %s189 = scalar_lea.vmem [#allocation2], %s188
        %p190 = pneg %p42
        %p191 = pneg %p39
        %p192 = pneg %p63
        %p193 = pneg %p60
        %p194 = pneg %p84
        %p195 = pneg %p81
        %p196 = pneg %p110
        %p197 = pneg %p107
        %s198 = sand.u32 %s97, 1
        %s199 = scalar_lea.sflag [#allocation4], %s198
        %s200 = sand.u32 %s97, 1
        %s201 = smul.addr %s200, 8
        %s202 = scalar_lea.vmem [#allocation7], %s201
        %v203 = vld [vmem:[%s174] sm:$0xff]
        %204 = vadd.xlane.f32.xlu0 %v203
        %v205 = vpop.xlane.xlu0 %204
        %v206 = vmul.f32 %v203, %v203
        %207 = vadd.xlane.f32.xlu0 %v206
        %v208 = vpop.xlane.xlu0 %207
        %v209 = vmul.f32 %v205, 0.0078125
        %v210 = vmul.f32 %v208, 0.0078125
        %v211 = vmul.f32 %v209, %v209
        %v212 = vsub.f32 %v210, %v211
        %v213 = vadd.f32 %v212, 1e-05
        %v214 = vrsqrt.pop %v213
        %v215 = vmul.f32 %v214, %v213
        %v216 = vmul.f32 %v215, %v214
        %v217 = vmul.f32 0.5, %v216
        %v218 = vsub.f32 1.5, %v217
        %v219 = vmul.f32 %v214, %v218
        %vm220 = vweird.f32 %v213
        %vm221 = vweird.f32 %v214
        %vm222 = vmor %vm220, %vm221
        %v223 = vsel %vm222, %v214, %v219
        %v224 = vsub.f32 %v203, %v209
        %v225 = vmul.f32 %v224, %v223
        %v226 = vld [vmem:[#allocation5] sm:$0x1]
        %v228 = vperm.slane %v226, 0
        %v230 = vmul.f32 %v225, %v228
        %v231 = vld [vmem:[%s2] sm:$0x1]
        %v233 = vperm.slane %v231, 0
        %v235 = vadd.f32 %v230, %v233
        %236 = vst [vmem:[%s202] sm:$0xff] %v235
        %s237 = sand.u32 %s97, 1
        %s238 = scalar_lea.sflag [#allocation4], %s237
        %s239 = sand.u32 %s97, 1
        %s240 = smul.addr %s239, 8
        %s241 = scalar_lea.vmem [#allocation7], %s240
        // Predicated region
        $region41: #{tpu_custom_call.1} parent=31 // pred_check
          %p242 = pneg %p107
        $region42: #{tpu_custom_call.1} parent=31 // pred_check_branch
          %244 = sbr.rel (%p242) target = $region44
        $region43: #{tpu_custom_call.1} parent=31 // pred_region
          %246 = vsyncadd %s238, 0
          %s247 = smul.addr %s21, 8
          %s248 = scalar_lea.hbm %s3, %s247
          %s250 = sshll.u32 %s241, 4
          %s251 = int_to_ptr.vmem [resolvable:$true] %s250
          %s252 = sshll.u32 %s248, 4
          %s253 = int_to_ptr.hbm [resolvable:$true] %s252
          %255 = dma.vmem_to_hbm [thread:$0]  %s251, 128, %s253, %s238
        $region44: #{tpu_custom_call.1} parent=31 // pred_fallthru
          _
      $region32: #{tpu_custom_call.1} parent=5 // pred_fallthru
        _
      %p256 = scmp.le.s32.totalorder 2, %s16
      // Predicated region
      $region45: #{tpu_custom_call.1} parent=5 // pred_check
        %p257 = pneg %p256
      $region46: #{tpu_custom_call.1} parent=5 // pred_check_branch
        %259 = sbr.rel (%p257) target = $region48
      $region47: #{tpu_custom_call.1} parent=5 // pred_region
        %s260 = ssub.s32 %s16, 2
        // Predicated region
        $region49: #{tpu_custom_call.1} parent=47 // pred_check
          %p261 = pneg %p113
        $region50: #{tpu_custom_call.1} parent=47 // pred_check_branch
          %263 = sbr.rel (%p261) target = $region52
        $region51: #{tpu_custom_call.1} parent=47 // pred_region
          %s264 = sand.u32 %s98, 1
          %s265 = scalar_lea.sflag [#allocation4], %s264
          %s266 = sand.u32 %s98, 1
          %s267 = smul.addr %s266, 8
          %s268 = scalar_lea.vmem [#allocation7], %s267
          %270 = dma.done %s265, 128
        $region52: #{tpu_custom_call.1} parent=47 // pred_fallthru
          _
      $region48: #{tpu_custom_call.1} parent=5 // pred_fallthru
        _
    $region6: #{tpu_custom_call.1} parent=1 // loop_footer
      %s20 = sadd.s32 1, %s16
    $region7: #{tpu_custom_call.1} parent=1 // loop_footer_branch
      %15 = sbr.rel target = $region3
    $region8: #{tpu_custom_call.1} parent=1 // loop_exit
      _
    %271 = vsyncpa [#allocation3], 1
    %s272 = scalar_lea.sflag [#allocation3], 1
    %273 = vsyncpa %s272, 1
    %274 = vsyncpa [#allocation6], 1
    %275 = vsyncpa [#allocation4], 1
    %s276 = scalar_lea.sflag [#allocation4], 1
    %277 = vsyncpa %s276, 1

</llo_original>
